<compile_context>
chip_gen: v5e
topology: v5e:2x2
jax: 0.10.0
libtpu: 0.0.40
codegen_flags: <defaults>
</compile_context>

<pallas_src>
import jax
import jax.numpy as jnp
from jax.experimental import pallas as pl
from jax.experimental.pallas import tpu as pltpu

LN_EPS = 1e-5  # nn.LayerNorm default


def _round_up(x, m):
    return -(-x // m) * m


def _tpu_vmem_capacity_bytes():
    """Best-effort per-core VMEM capacity; conservative fallback (v7x per-TC)."""
    try:
        info = pltpu.get_tpu_info()
        for attr in ("vmem_capacity_bytes", "vmem_bytes", "vmem_size_bytes"):
            v = getattr(info, attr, None)
            if v:
                return int(v)
    except Exception:
        pass
    return 64 * 1024 * 1024


def _choose_tile_t(T, c_block, itemsize, sublane, budget_bytes):
    """Sequence-tile rows for one grid step.

    Per-row VMEM footprint (lane-padded minor dim):
      * input block, double-buffered : 2 * c_lane * itemsize
      * output block, double-buffered: 2 * c_lane * itemsize
      * in-kernel f32 temporaries    : ~3 * c_lane * 4   (x_f32, d, d*d / output)
    """
    c_lane = _round_up(c_block, 128)                # (8,128) lane padding in VMEM
    bytes_per_row = c_lane * (4 * itemsize + 3 * 4)
    max_rows = max(sublane, budget_bytes // bytes_per_row)
    t_tile = min(int(max_rows), T)
    t_tile = max(sublane, (t_tile // sublane) * sublane)
    return t_tile


def make_saln_kernel(c_valid, c_block, eps=LN_EPS):
    """Kernel factory.  c_block is the (possibly lane-padded) block width,
    c_valid the true channel count used for the statistics."""
    need_mask = c_block > c_valid
    inv_c = 1.0 / float(c_valid)

    def kernel(x_ref, gamma_ref, beta_ref, o_ref):
        # x_ref: (1, tT, c_block); gamma/beta: (1, 1, c_block); o_ref: (1, tT, c_block)
        x = x_ref[0].astype(jnp.float32)                       # (tT, c_block)

        if need_mask:
            lane = jax.lax.broadcasted_iota(jnp.int32, x.shape, 1)
            mask = lane < c_valid
            s1 = jnp.sum(jnp.where(mask, x, 0.0), axis=-1, keepdims=True)
        else:
            s1 = jnp.sum(x, axis=-1, keepdims=True)
        mean = s1 * inv_c                                       # (tT, 1)

        # Two-pass variance: numerically stable, same full-tile op count as
        # the fused E[x^2]-E[x]^2 form (and var >= 0 by construction).
        d = x - mean                                            # (tT, c_block)
        dm = jnp.where(mask, d, 0.0) if need_mask else d
        var = jnp.sum(dm * dm, axis=-1, keepdims=True) * inv_c  # (tT, 1)
        inv_std = jax.lax.rsqrt(var + eps)                      # EUP

        gamma = gamma_ref[0].astype(jnp.float32)                # (1, c_block)
        beta = beta_ref[0].astype(jnp.float32)                  # (1, c_block)
        # 4 full-tile VALU ops (minimum given gamma varies along lanes and
        # mean/inv_std along sublanes); cast folded into the store.
        o_ref[0] = (gamma * (d * inv_std) + beta).astype(o_ref.dtype)

    return kernel


def style_adaptive_layer_norm(x, style_code, weight_t, bias):
    """x: (B, T, C), style_code: (B, S),
       weight_t: (S, 2C) (transposed nn.Linear weight), bias: (2C,)."""
    B, T, C = x.shape

    # --- Hoisted style projection: one (B,S)@(S,2C) GEMM in plain XLA. ---
    proj = (style_code.astype(jnp.float32) @ weight_t.astype(jnp.float32)
            + bias.astype(jnp.float32))                         # (B, 2C) f32
    gamma2 = proj[:, :C]                                        # (B, C)
    beta2 = proj[:, C:]                                         # (B, C)

    # --- Lane-density decision for the channel (minor) axis. ---
    c_lane = _round_up(C, 128)
    # Pad C only when it is cheap (<= 2x) — dense vst beats masked vst.msk then.
    pad_c = (C % 128 != 0) and (c_lane <= 2 * C)
    c_block = c_lane if pad_c else C

    if pad_c:
        x_in = jnp.pad(x, ((0, 0), (0, 0), (0, c_block - C)))
        gamma = jnp.pad(gamma2, ((0, 0), (0, c_block - C))).reshape(B, 1, c_block)
        beta = jnp.pad(beta2, ((0, 0), (0, c_block - C))).reshape(B, 1, c_block)
    else:
        x_in = x
        gamma = gamma2.reshape(B, 1, C)
        beta = beta2.reshape(B, 1, C)

    # --- Generation-aware VMEM budget & sequence tiling (no T padding). ---
    itemsize = jnp.dtype(x.dtype).itemsize
    sublane = {4: 8, 2: 16, 1: 32}.get(itemsize, 8)             # dtype row packing
    cap = _tpu_vmem_capacity_bytes()
    budget = min(cap // 3, 32 * 1024 * 1024)                    # working-set target
    vmem_limit = int(min(cap - cap // 8, 2 * budget))           # explicit scoped limit

    t_tile = _choose_tile_t(T, c_block, itemsize, sublane, budget)
    n_t = pl.cdiv(T, t_tile)
    # v7x dual TensorCore: make sure there are >= 2 parallel grid units.
    if B * n_t < 2 and T > sublane:
        t_tile = max(sublane, _round_up(-(-T // 2), sublane))
        n_t = pl.cdiv(T, t_tile)

    kernel = make_saln_kernel(c_valid=C, c_block=c_block)

    out = pl.pallas_call(
        kernel,
        out_shape=jax.ShapeDtypeStruct((B, T, c_block), x.dtype),
        grid_spec=pl.GridSpec(
            grid=(B, n_t),
            in_specs=[
                pl.BlockSpec((1, t_tile, c_block), lambda b, t: (b, t, 0)),  # x
                pl.BlockSpec((1, 1, c_block), lambda b, t: (b, 0, 0)),       # gamma
                pl.BlockSpec((1, 1, c_block), lambda b, t: (b, 0, 0)),       # beta
            ],
            out_specs=pl.BlockSpec((1, t_tile, c_block), lambda b, t: (b, t, 0)),
        ),
        compiler_params=pltpu.CompilerParams(
            dimension_semantics=("parallel", "parallel"),
            vmem_limit_bytes=vmem_limit),
    )(x_in, gamma, beta)

    if pad_c:
        out = out[:, :, :C]
    return out


def reference(x, style_code, weight_t, bias):
    proj = style_code @ weight_t + bias                         # (B, 2C)
    C = x.shape[-1]
    gamma = proj[:, None, :C]
    beta = proj[:, None, C:]
    mean = jnp.mean(x, axis=-1, keepdims=True)
    var = jnp.mean((x - mean) ** 2, axis=-1, keepdims=True)
    x_hat = (x - mean) / jnp.sqrt(var + LN_EPS)
    return gamma * x_hat + beta


if __name__ == "__main__":
    B, T, C, S = 2, 8, 32, 16  # batch, seq, in_channel, style_dim

    key = jax.random.PRNGKey(0)
    kx, ks, kw = jax.random.split(key, 3)

    x = jax.random.normal(kx, (B, T, C), dtype=jnp.float32)
    style_code = jax.random.normal(ks, (B, S), dtype=jnp.float32)

    # nn.Linear(S, 2C): weight (2C, S); we store its transpose (S, 2C).
    # Module __init__ sets bias[:C] = 1, bias[C:] = 0.
    bound = 1.0 / jnp.sqrt(S)
    weight_t = jax.random.uniform(kw, (S, 2 * C), dtype=jnp.float32,
                                  minval=-bound, maxval=bound)
    bias = jnp.concatenate([jnp.ones((C,), jnp.float32),
                            jnp.zeros((C,), jnp.float32)])

    out = style_adaptive_layer_norm(x, style_code, weight_t, bias)
    out = jax.block_until_ready(out)

    ref = reference(x, style_code, weight_t, bias)
    assert out.shape == (B, T, C)
    assert jnp.allclose(out, ref, atol=1e-4, rtol=1e-4)

    print("KERNEL_OK")
</pallas_src>

<mosaic_0001>
module attributes {stable_mosaic.version = 11 : i64} {
  func.func @kernel(%arg0: i32, %arg1: i32, %arg2: memref<1x8x32xf32, #tpu.memory_space<vmem>>, %arg3: memref<1x1x32xf32, #tpu.memory_space<vmem>>, %arg4: memref<1x1x32xf32, #tpu.memory_space<vmem>>, %arg5: memref<1x8x32xf32, #tpu.memory_space<vmem>>) attributes {dimension_semantics = [#tpu.dimension_semantics<parallel>, #tpu.dimension_semantics<parallel>], iteration_bounds = array<i64: 2, 1>, scalar_prefetch = 0 : i64, scratch_operands = 0 : i64, tpu.core_type = #tpu.core_type<tc>, window_params = [{transform_indices = @transform_0, window_bounds = array<i64: 1, 8, 32>}, {transform_indices = @transform_1, window_bounds = array<i64: 1, 1, 32>}, {transform_indices = @transform_2, window_bounds = array<i64: 1, 1, 32>}, {transform_indices = @transform_3, window_bounds = array<i64: 1, 8, 32>}]} {
    %c0 = arith.constant 0 : index
    %c0_0 = arith.constant 0 : index
    %c0_1 = arith.constant 0 : index
    %0 = vector.load %arg2[%c0, %c0_0, %c0_1] : memref<1x8x32xf32, #tpu.memory_space<vmem>>, vector<1x8x32xf32>
    %1 = vector.shape_cast %0 : vector<1x8x32xf32> to vector<8x32xf32>
    %cst = arith.constant dense<0.000000e+00> : vector<8xf32>
    %2 = vector.multi_reduction <add>, %1, %cst [1] : vector<8x32xf32> to vector<8xf32>
    %3 = vector.shape_cast %2 : vector<8xf32> to vector<8x1xf32>
    %cst_2 = arith.constant 3.125000e-02 : f32
    %4 = vector.broadcast %cst_2 : f32 to vector<8x1xf32>
    %5 = arith.mulf %3, %4 : vector<8x1xf32>
    %6 = vector.broadcast %5 : vector<8x1xf32> to vector<8x32xf32>
    %7 = arith.subf %1, %6 : vector<8x32xf32>
    %8 = arith.mulf %7, %7 : vector<8x32xf32>
    %cst_3 = arith.constant dense<0.000000e+00> : vector<8xf32>
    %9 = vector.multi_reduction <add>, %8, %cst_3 [1] : vector<8x32xf32> to vector<8xf32>
    %10 = vector.shape_cast %9 : vector<8xf32> to vector<8x1xf32>
    %cst_4 = arith.constant 3.125000e-02 : f32
    %11 = vector.broadcast %cst_4 : f32 to vector<8x1xf32>
    %12 = arith.mulf %10, %11 : vector<8x1xf32>
    %cst_5 = arith.constant 9.99999974E-6 : f32
    %13 = vector.broadcast %cst_5 : f32 to vector<8x1xf32>
    %14 = arith.addf %12, %13 : vector<8x1xf32>
    %15 = math.rsqrt %14 : vector<8x1xf32>
    %c0_6 = arith.constant 0 : index
    %c0_7 = arith.constant 0 : index
    %c0_8 = arith.constant 0 : index
    %16 = vector.load %arg3[%c0_6, %c0_7, %c0_8] : memref<1x1x32xf32, #tpu.memory_space<vmem>>, vector<1x1x32xf32>
    %17 = vector.shape_cast %16 : vector<1x1x32xf32> to vector<1x32xf32>
    %c0_9 = arith.constant 0 : index
    %c0_10 = arith.constant 0 : index
    %c0_11 = arith.constant 0 : index
    %18 = vector.load %arg4[%c0_9, %c0_10, %c0_11] : memref<1x1x32xf32, #tpu.memory_space<vmem>>, vector<1x1x32xf32>
    %19 = vector.shape_cast %18 : vector<1x1x32xf32> to vector<1x32xf32>
    %20 = vector.broadcast %15 : vector<8x1xf32> to vector<8x32xf32>
    %21 = arith.mulf %7, %20 : vector<8x32xf32>
    %22 = vector.broadcast %17 : vector<1x32xf32> to vector<8x32xf32>
    %23 = arith.mulf %22, %21 : vector<8x32xf32>
    %24 = vector.broadcast %19 : vector<1x32xf32> to vector<8x32xf32>
    %25 = arith.addf %23, %24 : vector<8x32xf32>
    %c0_12 = arith.constant 0 : index
    %c0_13 = arith.constant 0 : index
    %c0_14 = arith.constant 0 : index
    %26 = vector.load %arg5[%c0_12, %c0_13, %c0_14] : memref<1x8x32xf32, #tpu.memory_space<vmem>>, vector<1x8x32xf32>
    %27 = vector.shape_cast %26 : vector<1x8x32xf32> to vector<8x32xf32>
    %28 = vector.shape_cast %25 : vector<8x32xf32> to vector<1x8x32xf32>
    tpu.vector_store %arg5[%c0_12, %c0_13, %c0_14], %28 {strides = array<i32>} : memref<1x8x32xf32, #tpu.memory_space<vmem>>, vector<1x8x32xf32>,
    return
  }
  func.func @transform_0(%arg0: i32, %arg1: i32) -> (i32, i32, i32) {
    %c0_i32 = arith.constant 0 : i32
    %c0_i32_0 = arith.constant 0 : i32
    return %arg0, %arg1, %c0_i32 : i32, i32, i32
  }
  func.func @transform_1(%arg0: i32, %arg1: i32) -> (i32, i32, i32) {
    %c0_i32 = arith.constant 0 : i32
    %c0_i32_0 = arith.constant 0 : i32
    %c0_i32_1 = arith.constant 0 : i32
    return %arg0, %c0_i32, %c0_i32_0 : i32, i32, i32
  }
  func.func @transform_2(%arg0: i32, %arg1: i32) -> (i32, i32, i32) {
    %c0_i32 = arith.constant 0 : i32
    %c0_i32_0 = arith.constant 0 : i32
    %c0_i32_1 = arith.constant 0 : i32
    return %arg0, %c0_i32, %c0_i32_0 : i32, i32, i32
  }
  func.func @transform_3(%arg0: i32, %arg1: i32) -> (i32, i32, i32) {
    %c0_i32 = arith.constant 0 : i32
    %c0_i32_0 = arith.constant 0 : i32
    return %arg0, %arg1, %c0_i32 : i32, i32, i32
  }
}

</mosaic_0001>

<llo_original>
// kernel: tpu_custom_call.1
$region0: #{tpu_custom_call.1}
  #allocation0 [shape = 'u32[]', space=smem, size = 0x4, offset = 0x4, fixed_abs, tag = 'smem constant byte address 0x4 - core index']
  #allocation1 [shape = 'u32[72,128]{1,0:T(1,128)}', space=vmem, size = 0x9000, scoped, tag = 'internal scratch']
  %s0 = inlined_call_operand.hbm [shape: f32[2,8,32], index: 0, kind: input, shape index: {}]
  %s1 = inlined_call_operand.hbm [shape: f32[2,1,32], index: 1, kind: input, shape index: {}]
  %s2 = inlined_call_operand.hbm [shape: f32[2,1,32], index: 2, kind: input, shape index: {}]
  %s3 = inlined_call_operand.hbm [shape: f32[2,8,32], index: 3, kind: output, shape index: {}]
  %s4 = sld [smem:[#allocation0]]
  $region57: #{tpu_custom_call.1} parent=0
    _
  %s6 = ssub.s32 1, %s4
  %s7 = scalar_select 0, %s6, %s4
  $region1: #{tpu_custom_call.1} parent=0
    #allocation2 [shape = 'u8[8192]{0}', space=vmem, size = 0x2000, scoped, tag = 'input window, operand 0']
    #allocation3 [shape = 's32[2]{0}', space=sflag, size = 0x8, scoped, tag = 'scoped memory for tpu_custom_call.1']
    #allocation4 [shape = 's32[2]{0}', space=sflag, size = 0x8, scoped, tag = 'scoped memory for tpu_custom_call.1']
    #allocation5 [shape = 'u8[1024]{0}', space=vmem, size = 0x400, scoped, tag = 'input window, operand 1']
    #allocation6 [shape = 's32[2]{0}', space=sflag, size = 0x8, scoped, tag = 'scoped memory for tpu_custom_call.1']
    #allocation7 [shape = 'u8[1024]{0}', space=vmem, size = 0x400, scoped, tag = 'input window, operand 2']
    #allocation8 [shape = 'u8[8192]{0}', space=vmem, size = 0x2000, scoped, tag = 'output window, operand 0']
    %8 = vsyncpa [#allocation3], 0
    %s9 = scalar_lea.sflag [#allocation3], 1
    %10 = vsyncpa %s9, 0
    %11 = vsyncpa [#allocation6], 0
    %s12 = scalar_lea.sflag [#allocation6], 1
    %13 = vsyncpa %s12, 0
    %14 = vsyncpa [#allocation4], 0
    %s15 = scalar_lea.sflag [#allocation4], 1
    %16 = vsyncpa %s15, 0
    loop: start=0, step=1, limit=4
    $region2: #{tpu_custom_call.1} parent=1 // loop_pre_header
      _
    $region3: #{tpu_custom_call.1} parent=1 // loop_header
      %s18 = sphi 0, %s22
      %p19 = scmp.ge.s32.totalorder %s18, 4
      %s25 = sphi 0, %s37
      %s26 = sphi 0, %s33
      %s27 = sphi 0, %s25
      %s28 = sphi 0, %s26
      %s29 = sphi 0, %s27
      %s30 = sphi 0, %s28
      %s42 = sphi 0, %s44
      %s45 = sphi 0, %s42
      %s46 = sphi 0, %s45
      %s62 = sphi 0, %s46
      %s68 = sphi 0, %s70
      %s71 = sphi 0, %s68
      %s72 = sphi 0, %s71
      %s88 = sphi 0, %s72
      %s94 = sphi 0, %s96
      %s97 = sphi 0, %s94
      %s98 = sphi 0, %s97
      %s114 = sphi 0, %s98
      %s122 = sphi 0, %s124
      %s125 = sphi 0, %s122
      %s126 = sphi 0, %s125
      %s142 = sphi 0, %s126
    $region4: #{tpu_custom_call.1} parent=1 // loop_header_branch
      %21 = sbr.rel (%p19) target = $region8
    $region5: #{tpu_custom_call.1} parent=1 // loop_body
      %s23 = ssub.s32 %s18, 1
      %s24 = ssub.s32 %s18, 2
      %s31 = sadd.s32 1, %s26
      %p32 = scmp.ge.s32.totalorder %s31, 1
      %s33 = scalar_select %p32, 0, %s31
      %s34 = sadd.s32 1, %s25
      %s35 = scalar_select %p32, %s34, %s25
      %p36 = scmp.ge.s32.totalorder %s35, 2
      %s37 = scalar_select %p36, 0, %s35
      %s38 = ssub.s32 %s25, %s37
      %s39 = ssub.s32 %s26, %s33
      %s40 = sor.u32 %s38, %s39
      %p41 = scmp.eq.s32.totalorder %s40, 0
      %s43 = sadd.s32 %s42, 1
      %s44 = scalar_select %p41, %s42, %s43
      %p47 = pneg %p41
      %p48 = scmp.eq.s32.totalorder %s18, 1
      %p49 = por %p47, %p48
      %p50 = scmp.ne.s32.totalorder %s42, %s45
      %p51 = scmp.eq.s32.totalorder %s18, 0
      %p52 = por %p50, %p51
      %p53 = scmp.ne.s32.totalorder %s42, %s45
      %p54 = scmp.eq.s32.totalorder %s23, 1
      %p55 = por %p53, %p54
      %p56 = scmp.ne.s32.totalorder %s45, %s46
      %p57 = scmp.eq.s32.totalorder %s23, 0
      %p58 = por %p56, %p57
      %p59 = scmp.ne.s32.totalorder %s45, %s46
      %p60 = scmp.eq.s32.totalorder %s24, 1
      %p61 = por %p59, %p60
      %p63 = scmp.ne.s32.totalorder %s46, %s62
      %p64 = scmp.eq.s32.totalorder %s24, 0
      %p65 = por %p63, %p64
      %s66 = ssub.s32 %s25, %s37
      %p67 = scmp.eq.s32.totalorder %s66, 0
      %s69 = sadd.s32 %s68, 1
      %s70 = scalar_select %p67, %s68, %s69
      %p73 = pneg %p67
      %p74 = scmp.eq.s32.totalorder %s18, 1
      %p75 = por %p73, %p74
      %p76 = scmp.ne.s32.totalorder %s68, %s71
      %p77 = scmp.eq.s32.totalorder %s18, 0
      %p78 = por %p76, %p77
      %p79 = scmp.ne.s32.totalorder %s68, %s71
      %p80 = scmp.eq.s32.totalorder %s23, 1
      %p81 = por %p79, %p80
      %p82 = scmp.ne.s32.totalorder %s71, %s72
      %p83 = scmp.eq.s32.totalorder %s23, 0
      %p84 = por %p82, %p83
      %p85 = scmp.ne.s32.totalorder %s71, %s72
      %p86 = scmp.eq.s32.totalorder %s24, 1
      %p87 = por %p85, %p86
      %p89 = scmp.ne.s32.totalorder %s72, %s88
      %p90 = scmp.eq.s32.totalorder %s24, 0
      %p91 = por %p89, %p90
      %s92 = ssub.s32 %s25, %s37
      %p93 = scmp.eq.s32.totalorder %s92, 0
      %s95 = sadd.s32 %s94, 1
      %s96 = scalar_select %p93, %s94, %s95
      %p99 = pneg %p93
      %p100 = scmp.eq.s32.totalorder %s18, 1
      %p101 = por %p99, %p100
      %p102 = scmp.ne.s32.totalorder %s94, %s97
      %p103 = scmp.eq.s32.totalorder %s18, 0
      %p104 = por %p102, %p103
      %p105 = scmp.ne.s32.totalorder %s94, %s97
      %p106 = scmp.eq.s32.totalorder %s23, 1
      %p107 = por %p105, %p106
      %p108 = scmp.ne.s32.totalorder %s97, %s98
      %p109 = scmp.eq.s32.totalorder %s23, 0
      %p110 = por %p108, %p109
      %p111 = scmp.ne.s32.totalorder %s97, %s98
      %p112 = scmp.eq.s32.totalorder %s24, 1
      %p113 = por %p111, %p112
      %p115 = scmp.ne.s32.totalorder %s98, %s114
      %p116 = scmp.eq.s32.totalorder %s24, 0
      %p117 = por %p115, %p116
      %s118 = ssub.s32 %s25, %s37
      %s119 = ssub.s32 %s26, %s33
      %s120 = sor.u32 %s118, %s119
      %p121 = scmp.eq.s32.totalorder %s120, 0
      %s123 = sadd.s32 %s122, 1
      %s124 = scalar_select %p121, %s122, %s123
      %p127 = pneg %p121
      %p128 = scmp.eq.s32.totalorder %s18, 1
      %p129 = por %p127, %p128
      %p130 = scmp.ne.s32.totalorder %s122, %s125
      %p131 = scmp.eq.s32.totalorder %s18, 0
      %p132 = por %p130, %p131
      %p133 = scmp.ne.s32.totalorder %s122, %s125
      %p134 = scmp.eq.s32.totalorder %s23, 1
      %p135 = por %p133, %p134
      %p136 = scmp.ne.s32.totalorder %s125, %s126
      %p137 = scmp.eq.s32.totalorder %s23, 0
      %p138 = por %p136, %p137
      %p139 = scmp.ne.s32.totalorder %s125, %s126
      %p140 = scmp.eq.s32.totalorder %s24, 1
      %p141 = por %p139, %p140
      %p143 = scmp.ne.s32.totalorder %s126, %s142
      %p144 = scmp.eq.s32.totalorder %s24, 0
      %p145 = por %p143, %p144
      %p146 = scmp.le.s32.totalorder 1, %s18
      %p147 = scmp.lt.s32.totalorder %s18, 3
      %p148 = pnand %p146, %p147
      %p149 = pneg %p148
      // Predicated region
      $region9: #{tpu_custom_call.1} parent=5 // pred_check
        _
      $region10: #{tpu_custom_call.1} parent=5 // pred_check_branch
        %151 = sbr.rel (%p148) target = $region12
      $region11: #{tpu_custom_call.1} parent=5 // pred_region
        %s152 = ssub.s32 %s18, 1
      $region12: #{tpu_custom_call.1} parent=5 // pred_fallthru
        _
      %p153 = scmp.lt.s32.totalorder %s18, 2
      // Predicated region
      $region13: #{tpu_custom_call.1} parent=5 // pred_check
        %p154 = pneg %p153
      $region14: #{tpu_custom_call.1} parent=5 // pred_check_branch
        %156 = sbr.rel (%p154) target = $region16
      $region15: #{tpu_custom_call.1} parent=5 // pred_region
        // Predicated region
        $region17: #{tpu_custom_call.1} parent=15 // pred_check
          %p157 = pneg %p52
        $region18: #{tpu_custom_call.1} parent=15 // pred_check_branch
          %159 = sbr.rel (%p157) target = $region20
        $region19: #{tpu_custom_call.1} parent=15 // pred_region
          %s160 = sand.u32 %s42, 1
          %s161 = scalar_lea.sflag [#allocation3], %s160
          %s162 = sand.u32 %s42, 1
          %s163 = smul.addr %s162, 8
          %s164 = scalar_lea.vmem [#allocation2], %s163
          %166 = vsyncadd %s161, 0
          %s167 = sadd.s32 %s26, %s25
          %s168 = smul.addr %s167, 8
          %s169 = scalar_lea.hbm %s0, %s168
          %s171 = sshll.u32 %s169, 4
          %s172 = int_to_ptr.hbm [resolvable:$true] %s171
          %s173 = sshll.u32 %s164, 4
          %s174 = int_to_ptr.vmem [resolvable:$true] %s173
          %176 = dma.hbm_to_vmem [thread:$0]  %s172, 128, %s174, %s161
        $region20: #{tpu_custom_call.1} parent=15 // pred_fallthru
          _
        // Predicated region
        $region21: #{tpu_custom_call.1} parent=15 // pred_check
          %p177 = pneg %p78
        $region22: #{tpu_custom_call.1} parent=15 // pred_check_branch
          %179 = sbr.rel (%p177) target = $region24
        $region23: #{tpu_custom_call.1} parent=15 // pred_region
          %s180 = sand.u32 %s18, 1
          %s181 = scalar_lea.sflag [#allocation6], %s180
          %s182 = sand.u32 %s68, 1
          %s183 = scalar_lea.vmem [#allocation5], %s182
          %185 = vsyncadd %s181, 0
          %s186 = scalar_lea.hbm %s1, %s25
          %s188 = sshll.u32 %s186, 4
          %s189 = int_to_ptr.hbm [resolvable:$true] %s188
          %s190 = sshll.u32 %s183, 4
          %s191 = int_to_ptr.vmem [resolvable:$true] %s190
          %193 = dma.hbm_to_vmem [thread:$0]  %s189, 16, %s191, %s181
        $region24: #{tpu_custom_call.1} parent=15 // pred_fallthru
          _
        // Predicated region
        $region25: #{tpu_custom_call.1} parent=15 // pred_check
          %p194 = pneg %p104
        $region26: #{tpu_custom_call.1} parent=15 // pred_check_branch
          %196 = sbr.rel (%p194) target = $region28
        $region27: #{tpu_custom_call.1} parent=15 // pred_region
          %s197 = sand.u32 %s18, 1
          %s198 = scalar_lea.sflag [#allocation6], %s197
          %s199 = sand.u32 %s94, 1
          %s200 = scalar_lea.vmem [#allocation7], %s199
          %202 = vsyncadd %s198, 0
          %s203 = scalar_lea.hbm %s2, %s25
          %s205 = sshll.u32 %s203, 4
          %s206 = int_to_ptr.hbm [resolvable:$true] %s205
          %s207 = sshll.u32 %s200, 4
          %s208 = int_to_ptr.vmem [resolvable:$true] %s207
          %210 = dma.hbm_to_vmem [thread:$0]  %s206, 16, %s208, %s198
        $region28: #{tpu_custom_call.1} parent=15 // pred_fallthru
          _
      $region16: #{tpu_custom_call.1} parent=5 // pred_fallthru
        _
      %p211 = scmp.le.s32.totalorder 1, %s18
      %p212 = scmp.lt.s32.totalorder %s18, 3
      %p213 = pnand %p211, %p212
      %p214 = pneg %p213
      // Predicated region
      $region29: #{tpu_custom_call.1} parent=5 // pred_check
        _
      $region30: #{tpu_custom_call.1} parent=5 // pred_check_branch
        %216 = sbr.rel (%p213) target = $region32
      $region31: #{tpu_custom_call.1} parent=5 // pred_region
        %s217 = ssub.s32 %s18, 1
        %s218 = sand.u32 %s45, 1
        %s219 = scalar_lea.sflag [#allocation3], %s218
        %s220 = sand.u32 %s45, 1
        %s221 = smul.addr %s220, 8
        %s222 = scalar_lea.vmem [#allocation2], %s221
        // Predicated region
        $region33: #{tpu_custom_call.1} parent=31 // pred_check
          %p223 = pneg %p58
        $region34: #{tpu_custom_call.1} parent=31 // pred_check_branch
          %225 = sbr.rel (%p223) target = $region36
        $region35: #{tpu_custom_call.1} parent=31 // pred_region
          %227 = dma.done %s219, 128
        $region36: #{tpu_custom_call.1} parent=31 // pred_fallthru
          _
        %s228 = sand.u32 %s23, 1
        %s229 = scalar_lea.sflag [#allocation6], %s228
        %s230 = sand.u32 %s71, 1
        %s231 = scalar_lea.vmem [#allocation5], %s230
        // Predicated region
        $region37: #{tpu_custom_call.1} parent=31 // pred_check
          %p232 = pneg %p84
        $region38: #{tpu_custom_call.1} parent=31 // pred_check_branch
          %234 = sbr.rel (%p232) target = $region40
        $region39: #{tpu_custom_call.1} parent=31 // pred_region
          %236 = dma.done %s229, 16
        $region40: #{tpu_custom_call.1} parent=31 // pred_fallthru
          _
        %s237 = sand.u32 %s23, 1
        %s238 = scalar_lea.sflag [#allocation6], %s237
        %s239 = sand.u32 %s97, 1
        %s240 = scalar_lea.vmem [#allocation7], %s239
        // Predicated region
        $region41: #{tpu_custom_call.1} parent=31 // pred_check
          %p241 = pneg %p110
        $region42: #{tpu_custom_call.1} parent=31 // pred_check_branch
          %243 = sbr.rel (%p241) target = $region44
        $region43: #{tpu_custom_call.1} parent=31 // pred_region
          %245 = dma.done %s238, 16
        $region44: #{tpu_custom_call.1} parent=31 // pred_fallthru
          _
        %s246 = sand.u32 %s45, 1
        %s247 = scalar_lea.sflag [#allocation3], %s246
        %s248 = sand.u32 %s45, 1
        %s249 = smul.addr %s248, 8
        %s250 = scalar_lea.vmem [#allocation2], %s249
        %p251 = pneg %p58
        %p252 = pneg %p55
        %s253 = sand.u32 %s23, 1
        %s254 = scalar_lea.sflag [#allocation6], %s253
        %s255 = sand.u32 %s71, 1
        %s256 = scalar_lea.vmem [#allocation5], %s255
        %p257 = pneg %p84
        %p258 = pneg %p81
        %s259 = sand.u32 %s23, 1
        %s260 = scalar_lea.sflag [#allocation6], %s259
        %s261 = sand.u32 %s97, 1
        %s262 = scalar_lea.vmem [#allocation7], %s261
        %p263 = pneg %p110
        %p264 = pneg %p107
        %p265 = pneg %p138
        %p266 = pneg %p135
        %s267 = sand.u32 %s125, 1
        %s268 = scalar_lea.sflag [#allocation4], %s267
        %s269 = sand.u32 %s125, 1
        %s270 = smul.addr %s269, 8
        %s271 = scalar_lea.vmem [#allocation8], %s270
        %v272 = vld [vmem:[%s222] sm:$0xff]
        %vm273 = vcmask 261120
        %v274 = vsel %vm273, %v272, 0.0
        %275 = vadd.xlane.f32.xlu0 %v274
        %v276 = vpop.xlane.xlu0 %275
        %v277 = vmul.f32 %v276, 0.03125
        %v278 = vsub.f32 %v272, %v277
        %v279 = vmul.f32 %v278, %v278
        %v280 = vsel %vm273, %v279, 0.0
        %281 = vadd.xlane.f32.xlu0 %v280
        %v282 = vpop.xlane.xlu0 %281
        %v283 = vmul.f32 %v282, 0.03125
        %v284 = vadd.f32 %v283, 1e-05
        %v285 = vrsqrt.pop %v284
        %v286 = vmul.f32 %v285, %v284
        %v287 = vmul.f32 %v286, %v285
        %v288 = vmul.f32 0.5, %v287
        %v289 = vsub.f32 1.5, %v288
        %v290 = vmul.f32 %v285, %v289
        %vm291 = vweird.f32 %v284
        %vm292 = vweird.f32 %v285
        %vm293 = vmor %vm291, %vm292
        %v294 = vsel %vm293, %v285, %v290
        %v295 = vld [vmem:[%s231] sm:$0x1]
        %v296 = vld [vmem:[%s240] sm:$0x1]
        %v297 = vmul.f32 %v278, %v294
        %v299 = vperm.slane %v295, 0
        %v301 = vmul.f32 %v299, %v297
        %v303 = vperm.slane %v296, 0
        %v305 = vadd.f32 %v301, %v303
        %306 = vst.msk [vmem:[%s271] sm:$0xff] %vm273, %v305
        %s307 = sand.u32 %s125, 1
        %s308 = scalar_lea.sflag [#allocation4], %s307
        %s309 = sand.u32 %s125, 1
        %s310 = smul.addr %s309, 8
        %s311 = scalar_lea.vmem [#allocation8], %s310
        // Predicated region
        $region45: #{tpu_custom_call.1} parent=31 // pred_check
          %p312 = pneg %p135
        $region46: #{tpu_custom_call.1} parent=31 // pred_check_branch
          %314 = sbr.rel (%p312) target = $region48
        $region47: #{tpu_custom_call.1} parent=31 // pred_region
          %316 = vsyncadd %s308, 0
          %s317 = sadd.s32 %s28, %s27
          %s318 = smul.addr %s317, 8
          %s319 = scalar_lea.hbm %s3, %s318
          %s321 = sshll.u32 %s311, 4
          %s322 = int_to_ptr.vmem [resolvable:$true] %s321
          %s323 = sshll.u32 %s319, 4
          %s324 = int_to_ptr.hbm [resolvable:$true] %s323
          %326 = dma.vmem_to_hbm [thread:$0]  %s322, 128, %s324, %s308
        $region48: #{tpu_custom_call.1} parent=31 // pred_fallthru
          _
      $region32: #{tpu_custom_call.1} parent=5 // pred_fallthru
        _
      %p327 = scmp.le.s32.totalorder 2, %s18
      // Predicated region
      $region49: #{tpu_custom_call.1} parent=5 // pred_check
        %p328 = pneg %p327
      $region50: #{tpu_custom_call.1} parent=5 // pred_check_branch
        %330 = sbr.rel (%p328) target = $region52
      $region51: #{tpu_custom_call.1} parent=5 // pred_region
        %s331 = ssub.s32 %s18, 2
        // Predicated region
        $region53: #{tpu_custom_call.1} parent=51 // pred_check
          %p332 = pneg %p141
        $region54: #{tpu_custom_call.1} parent=51 // pred_check_branch
          %334 = sbr.rel (%p332) target = $region56
        $region55: #{tpu_custom_call.1} parent=51 // pred_region
          %s335 = sand.u32 %s126, 1
          %s336 = scalar_lea.sflag [#allocation4], %s335
          %s337 = sand.u32 %s126, 1
          %s338 = smul.addr %s337, 8
          %s339 = scalar_lea.vmem [#allocation8], %s338
          %341 = dma.done %s336, 128
        $region56: #{tpu_custom_call.1} parent=51 // pred_fallthru
          _
      $region52: #{tpu_custom_call.1} parent=5 // pred_fallthru
        _
    $region6: #{tpu_custom_call.1} parent=1 // loop_footer
      %s22 = sadd.s32 1, %s18
    $region7: #{tpu_custom_call.1} parent=1 // loop_footer_branch
      %17 = sbr.rel target = $region3
    $region8: #{tpu_custom_call.1} parent=1 // loop_exit
      _
    %342 = vsyncpa [#allocation3], 1
    %s343 = scalar_lea.sflag [#allocation3], 1
    %344 = vsyncpa %s343, 1
    %345 = vsyncpa [#allocation6], 1
    %s346 = scalar_lea.sflag [#allocation6], 1
    %347 = vsyncpa %s346, 1
    %348 = vsyncpa [#allocation4], 1
    %s349 = scalar_lea.sflag [#allocation4], 1
    %350 = vsyncpa %s349, 1

</llo_original>
